<compile_context>
chip_gen: v5e
topology: v5e:2x2
jax: 0.10.0
libtpu: 0.0.40
codegen_flags: <defaults>
</compile_context>

<pallas_src>
import functools

import jax
import jax.numpy as jnp
from jax.experimental import pallas as pl
from jax.experimental.pallas import tpu as pltpu


_MAX_CONCURRENT_DMAS = 8       # target DMAs in flight per TensorCore
_SHORT_ROW_BYTES = 512         # rows shorter than this get extra (row) chunking
_FN_CACHE = {}                 # (shape, dtype, sh, sw) -> jitted forward fn


# ---------------------------------------------------------------------------
# Small static helpers (all run at trace/build time, never in the kernel).
# ---------------------------------------------------------------------------
def _split_range(n, k):
    """Split range(n) into <= k contiguous (start, size) pieces."""
    k = max(1, min(n, k))
    base, rem = divmod(n, k)
    out, start = [], 0
    for i in range(k):
        size = base + (1 if i < rem else 0)
        if size:
            out.append((start, size))
            start += size
    return out


def _plan_chunks(B, sh, row_bytes, max_dmas):
    """Static (b_start, b_size, y_start, y_size) chunks covering (B, sh)."""
    target = max_dmas * (2 if row_bytes < _SHORT_ROW_BYTES else 1)
    nb = min(B, max_dmas)
    ny = 1
    if nb < target:
        ny = min(sh, max(1, target // nb))
    return tuple(
        (b0, bs, y0, ys)
        for (b0, bs) in _split_range(B, nb)
        for (y0, ys) in _split_range(sh, ny)
    )


def _largest_divisor_leq(n, cap):
    for d in range(min(n, max(1, cap)), 0, -1):
        if n % d == 0:
            return d
    return 1


def _num_tensorcores():
    """Best-effort TensorCores-per-chip count (megacore / v7x); default 1."""
    try:
        info = pltpu.get_tpu_info()
        for attr in ("num_cores", "core_count", "num_tensorcores",
                     "tensorcores_per_chip", "cores_per_chip"):
            v = getattr(info, attr, None)
            if isinstance(v, int) and v >= 1:
                return v
    except Exception:
        pass
    try:
        v = getattr(jax.devices()[0], "num_cores", None)
        if isinstance(v, int) and v >= 1:
            return v
    except Exception:
        pass
    return 1


# ---------------------------------------------------------------------------
# Primary path: DMA-only crop (HBM -> HBM strided copies, no VMEM round trip).
# ---------------------------------------------------------------------------
def _crop_dma_kernel(x_hbm, o_hbm, sem, *, ystart, xstart, sh, sw, full_w,
                     groups):
    def issue(chunks):
        copies = []
        for i, (b0, bs, y0, ys) in enumerate(chunks):
            if full_w:
                # Full-width crop: one contiguous burst of ys * W elements
                # per batch item instead of ys short strided rows.
                src = x_hbm.at[pl.ds(b0, bs), pl.ds(ystart + y0, ys), :]
            else:
                src = x_hbm.at[pl.ds(b0, bs), pl.ds(ystart + y0, ys),
                               pl.ds(xstart, sw)]
            dst = o_hbm.at[pl.ds(b0, bs), pl.ds(y0, ys), :]
            cp = pltpu.make_async_copy(src, dst, sem.at[i])
            cp.start()
            copies.append(cp)
        for cp in copies:          # start everything before waiting on anything
            cp.wait()

    if len(groups) == 1:
        issue(groups[0])
    else:
        # Grid axis is "parallel": on megacore chips each group's DMAs are
        # issued from a different TensorCore.
        for g, grp in enumerate(groups):
            pl.when(pl.program_id(0) == g)(functools.partial(issue, grp))


def _center_crop_bhw_dma(x, *, sh, sw, ystart, xstart, num_groups=1):
    B, H, W = x.shape
    itemsize = jnp.dtype(x.dtype).itemsize
    full_w = (xstart == 0 and sw == W)
    chunks = _plan_chunks(B, sh, sw * itemsize,
                          _MAX_CONCURRENT_DMAS * max(1, num_groups))
    num_groups = max(1, min(num_groups, len(chunks)))
    groups = tuple(tuple(chunks[g::num_groups]) for g in range(num_groups))
    max_per_group = max(len(g) for g in groups)

    kernel = functools.partial(
        _crop_dma_kernel, ystart=ystart, xstart=xstart, sh=sh, sw=sw,
        full_w=full_w, groups=groups)
    kwargs = dict(
        out_shape=jax.ShapeDtypeStruct((B, sh, sw), x.dtype),
        in_specs=[pl.BlockSpec(memory_space=pl.ANY)],
        out_specs=pl.BlockSpec(memory_space=pl.ANY),
        scratch_shapes=[pltpu.SemaphoreType.DMA((max_per_group,))],
    )
    if num_groups > 1:
        kwargs["grid"] = (num_groups,)
        kwargs["compiler_params"] = pltpu.CompilerParams(
            dimension_semantics=("parallel",))
    return pl.pallas_call(kernel, **kwargs)(x)


# ---------------------------------------------------------------------------
# Fallback 1: window-only DMA straight into the pipelined VMEM output block.
# Reads only sh*sw per plane, several planes per grid step.
# ---------------------------------------------------------------------------
def _crop_window_vmem_kernel(x_hbm, o_ref, sem, *, ystart, xstart, sh, sw, bt):
    b0 = pl.program_id(0) * bt
    cp = pltpu.make_async_copy(
        x_hbm.at[pl.ds(b0, bt), pl.ds(ystart, sh), pl.ds(xstart, sw)],
        o_ref, sem.at[0])
    cp.start()
    cp.wait()


def _center_crop_bhw_vmem_window(x, *, sh, sw, ystart, xstart):
    B, H, W = x.shape
    itemsize = jnp.dtype(x.dtype).itemsize
    # ~2 MiB output tile per step keeps per-grid-step overhead negligible and
    # stays far below v7x's 64 MiB VMEM even with double buffering.
    bt = _largest_divisor_leq(B, max(1, (2 << 20) // max(1, sh * sw * itemsize)))
    kernel = functools.partial(
        _crop_window_vmem_kernel, ystart=ystart, xstart=xstart,
        sh=sh, sw=sw, bt=bt)
    return pl.pallas_call(
        kernel,
        out_shape=jax.ShapeDtypeStruct((B, sh, sw), x.dtype),
        grid=(B // bt,),
        in_specs=[pl.BlockSpec(memory_space=pl.ANY)],
        out_specs=pl.BlockSpec((bt, sh, sw), lambda b: (b, 0, 0)),
        scratch_shapes=[pltpu.SemaphoreType.DMA((1,))],
        compiler_params=pltpu.CompilerParams(dimension_semantics=("parallel",)),
    )(x)


# ---------------------------------------------------------------------------
# Fallback 2 (last resort): known-good auto-pipelined full-plane VMEM copy.
# Only used if both DMA-window paths fail to compile on this jax version.
# ---------------------------------------------------------------------------
def _crop_fullplane_kernel(x_ref, o_ref, *, ystart, xstart, sh, sw):
    o_ref[...] = x_ref[:, ystart:ystart + sh, xstart:xstart + sw]


def _center_crop_bhw_fullplane(x, *, sh, sw, ystart, xstart):
    B, H, W = x.shape
    kernel = functools.partial(
        _crop_fullplane_kernel, ystart=ystart, xstart=xstart, sh=sh, sw=sw)
    return pl.pallas_call(
        kernel,
        out_shape=jax.ShapeDtypeStruct((B, sh, sw), x.dtype),
        grid=(B,),
        in_specs=[pl.BlockSpec((1, H, W), lambda b: (b, 0, 0))],
        out_specs=pl.BlockSpec((1, sh, sw), lambda b: (b, 0, 0)),
        compiler_params=pltpu.CompilerParams(dimension_semantics=("parallel",)),
    )(x)


# ---------------------------------------------------------------------------
# One-time (per signature) capability probe + jitted forward, and public API.
# ---------------------------------------------------------------------------
def _build_crop_fn(shape, dtype, sh, sw):
    ndim = len(shape)
    if ndim == 3:
        B, H, W = shape
    elif ndim == 4:
        N, C, H, W = shape
        B = N * C
    else:
        raise ValueError(f"Invalid input shape: {shape}")
    if sh > H or sw > W:
        raise ValueError(
            f"Crop size ({sh}, {sw}) larger than spatial dims ({H}, {W}).")
    # Same offset convention as the PyTorch module: (h - size) // 2.
    ystart = (H - sh) // 2
    xstart = (W - sw) // 2

    def wrap(crop_bhw):
        if ndim == 4:
            def fwd(x):
                y = crop_bhw(x.reshape(B, H, W))          # free (metadata) fold
                return y.reshape(shape[0], shape[1], sh, sw)
        else:
            def fwd(x):
                return crop_bhw(x)
        return jax.jit(fwd)

    common = dict(sh=sh, sw=sw, ystart=ystart, xstart=xstart)
    candidates = []
    cores = min(_num_tensorcores(), 2)
    if cores > 1:
        candidates.append(functools.partial(
            _center_crop_bhw_dma, num_groups=cores, **common))
    candidates.append(functools.partial(
        _center_crop_bhw_dma, num_groups=1, **common))
    candidates.append(functools.partial(_center_crop_bhw_vmem_window, **common))
    candidates.append(functools.partial(_center_crop_bhw_fullplane, **common))

    spec = jax.ShapeDtypeStruct(shape, jnp.dtype(dtype))
    chosen = None
    for impl in candidates:
        fn = wrap(impl)
        chosen = fn
        try:
            fn.lower(spec).compile()   # AOT compile probe; no runtime sync later
            return fn
        except Exception:
            continue
    return chosen


def cc_forward(x, size):
    """JAX/Pallas equivalent of CC(size).forward(x). Accepts 3-D or 4-D input."""
    if isinstance(size, int):
        size = (size, size)
    sh, sw = int(size[0]), int(size[1])
    key = (tuple(x.shape), jnp.dtype(x.dtype).name, sh, sw)
    fn = _FN_CACHE.get(key)
    if fn is None:
        fn = _build_crop_fn(tuple(x.shape), x.dtype, sh, sw)
        _FN_CACHE[key] = fn
    return fn(x)      # single jitted dispatch; no host sync on the real output


if __name__ == "__main__":
    key = jax.random.PRNGKey(0)
    k0, k1, k2 = jax.random.split(key, 3)

    # 4-D NCHW path (typical usage of the module).
    x = jax.random.normal(k0, (2, 4, 16, 16), dtype=jnp.float32)
    size = (8, 8)
    out = jax.block_until_ready(cc_forward(x, size))
    H, W = x.shape[-2:]
    ys, xs = (H - size[0]) // 2, (W - size[1]) // 2
    ref = x[:, :, ys:ys + size[0], xs:xs + size[1]]
    assert out.shape == (2, 4, 8, 8), out.shape
    assert jnp.array_equal(out, ref), "mismatch vs 4-D reference crop"

    # Second call hits the cached jitted forward (no recompile, no probe).
    out2 = jax.block_until_ready(cc_forward(x, size))
    assert jnp.array_equal(out2, ref), "mismatch on cached second call"

    # 3-D path.
    x3 = jax.random.normal(k1, (2, 16, 16), dtype=jnp.float32)
    out3 = jax.block_until_ready(cc_forward(x3, size))
    ref3 = x3[:, ys:ys + size[0], xs:xs + size[1]]
    assert jnp.array_equal(out3, ref3), "mismatch vs 3-D reference crop"

    # Odd, non-(8,128)-aligned spatial dims, offsets and crop sizes.
    x_odd = jax.random.normal(k2, (2, 3, 17, 19), dtype=jnp.float32)
    so = (5, 6)
    out_odd = jax.block_until_ready(cc_forward(x_odd, so))
    yo, xo = (17 - so[0]) // 2, (19 - so[1]) // 2
    ref_odd = x_odd[:, :, yo:yo + so[0], xo:xo + so[1]]
    assert jnp.array_equal(out_odd, ref_odd), "mismatch vs odd-shape reference crop"

    # Full-width crop exercises the contiguous-burst special case.
    xf = jax.random.normal(k0, (3, 2, 12, 16), dtype=jnp.float32)
    sf = (6, 16)
    out_f = jax.block_until_ready(cc_forward(xf, sf))
    yf = (12 - sf[0]) // 2
    ref_f = xf[:, :, yf:yf + sf[0], :]
    assert jnp.array_equal(out_f, ref_f), "mismatch vs full-width reference crop"

    print("KERNEL_OK")
</pallas_src>

<mosaic_0001>
module attributes {stable_mosaic.version = 11 : i64} {
  func.func @_crop_fullplane_kernel(%arg0: i32, %arg1: memref<1x16x16xf32, #tpu.memory_space<vmem>>, %arg2: memref<1x8x8xf32, #tpu.memory_space<vmem>>) attributes {dimension_semantics = [#tpu.dimension_semantics<parallel>], iteration_bounds = array<i64: 8>, scalar_prefetch = 0 : i64, scratch_operands = 0 : i64, tpu.core_type = #tpu.core_type<tc>, window_params = [{transform_indices = @transform_0, window_bounds = array<i64: 1, 16, 16>}, {transform_indices = @transform_1, window_bounds = array<i64: 1, 8, 8>}]} {
    %c0 = arith.constant 0 : index
    %c4 = arith.constant 4 : index
    %c4_0 = arith.constant 4 : index
    %0 = vector.load %arg1[%c0, %c4, %c4_0] : memref<1x16x16xf32, #tpu.memory_space<vmem>>, vector<1x8x8xf32>
    %c0_1 = arith.constant 0 : index
    %c0_2 = arith.constant 0 : index
    %c0_3 = arith.constant 0 : index
    %1 = vector.load %arg2[%c0_1, %c0_2, %c0_3] : memref<1x8x8xf32, #tpu.memory_space<vmem>>, vector<1x8x8xf32>
    tpu.vector_store %arg2[%c0_1, %c0_2, %c0_3], %0 {strides = array<i32>} : memref<1x8x8xf32, #tpu.memory_space<vmem>>, vector<1x8x8xf32>,
    return
  }
  func.func @transform_0(%arg0: i32) -> (i32, i32, i32) {
    %c0_i32 = arith.constant 0 : i32
    %c0_i32_0 = arith.constant 0 : i32
    %c0_i32_1 = arith.constant 0 : i32
    return %arg0, %c0_i32, %c0_i32_0 : i32, i32, i32
  }
  func.func @transform_1(%arg0: i32) -> (i32, i32, i32) {
    %c0_i32 = arith.constant 0 : i32
    %c0_i32_0 = arith.constant 0 : i32
    %c0_i32_1 = arith.constant 0 : i32
    return %arg0, %c0_i32, %c0_i32_0 : i32, i32, i32
  }
}

</mosaic_0001>

<llo_original>
// kernel: fwd.1
$region0: #{fwd.1}
  #allocation0 [shape = 'u32[]', space=smem, size = 0x4, offset = 0x4, fixed_abs, tag = 'smem constant byte address 0x4 - core index']
  #allocation1 [shape = 'u32[72,128]{1,0:T(1,128)}', space=vmem, size = 0x9000, scoped, tag = 'internal scratch']
  %s0 = inlined_call_operand.hbm [shape: f32[8,16,16], index: 0, kind: input, shape index: {}]
  %s1 = inlined_call_operand.hbm [shape: f32[8,8,8], index: 1, kind: output, shape index: {}]
  %s2 = sld [smem:[#allocation0]]
  $region41: #{fwd.1} parent=0
    _
  %s4 = ssub.s32 1, %s2
  %s5 = scalar_select 0, %s4, %s2
  $region1: #{fwd.1} parent=0
    #allocation2 [shape = 'u8[16384]{0}', space=vmem, size = 0x4000, scoped, tag = 'input window, operand 0']
    #allocation3 [shape = 's32[2]{0}', space=sflag, size = 0x8, scoped, tag = 'scoped memory for fwd.1']
    #allocation4 [shape = 's32[2]{0}', space=sflag, size = 0x8, scoped, tag = 'scoped memory for fwd.1']
    #allocation5 [shape = 'u8[8192]{0}', space=vmem, size = 0x2000, scoped, tag = 'output window, operand 0']
    %6 = vsyncpa [#allocation3], 0
    %s7 = scalar_lea.sflag [#allocation3], 1
    %8 = vsyncpa %s7, 0
    %9 = vsyncpa [#allocation4], 0
    %s10 = scalar_lea.sflag [#allocation4], 1
    %11 = vsyncpa %s10, 0
    loop: start=0, step=1, limit=10
    $region2: #{fwd.1} parent=1 // loop_pre_header
      _
    $region3: #{fwd.1} parent=1 // loop_header
      %s13 = sphi 0, %s17
      %p14 = scmp.ge.s32.totalorder %s13, 10
      %s23 = sphi 0, %s25
      %s26 = sphi 0, %s23
      %s27 = sphi 0, %s26
      %s43 = sphi 0, %s27
      %s49 = sphi 0, %s51
      %s52 = sphi 0, %s49
      %s53 = sphi 0, %s52
      %s69 = sphi 0, %s53
    $region4: #{fwd.1} parent=1 // loop_header_branch
      %16 = sbr.rel (%p14) target = $region8
    $region5: #{fwd.1} parent=1 // loop_body
      %s18 = ssub.s32 %s13, 1
      %s19 = ssub.s32 %s13, 2
      %s20 = sadd.s32 %s13, 1
      %s21 = ssub.s32 %s13, %s20
      %p22 = scmp.eq.s32.totalorder %s21, 0
      %s24 = sadd.s32 %s23, 1
      %s25 = scalar_select %p22, %s23, %s24
      %p28 = pneg %p22
      %p29 = scmp.eq.s32.totalorder %s13, 7
      %p30 = por %p28, %p29
      %p31 = scmp.ne.s32.totalorder %s23, %s26
      %p32 = scmp.eq.s32.totalorder %s13, 0
      %p33 = por %p31, %p32
      %p34 = scmp.ne.s32.totalorder %s23, %s26
      %p35 = scmp.eq.s32.totalorder %s18, 7
      %p36 = por %p34, %p35
      %p37 = scmp.ne.s32.totalorder %s26, %s27
      %p38 = scmp.eq.s32.totalorder %s18, 0
      %p39 = por %p37, %p38
      %p40 = scmp.ne.s32.totalorder %s26, %s27
      %p41 = scmp.eq.s32.totalorder %s19, 7
      %p42 = por %p40, %p41
      %p44 = scmp.ne.s32.totalorder %s27, %s43
      %p45 = scmp.eq.s32.totalorder %s19, 0
      %p46 = por %p44, %p45
      %s47 = ssub.s32 %s13, %s20
      %p48 = scmp.eq.s32.totalorder %s47, 0
      %s50 = sadd.s32 %s49, 1
      %s51 = scalar_select %p48, %s49, %s50
      %p54 = pneg %p48
      %p55 = scmp.eq.s32.totalorder %s13, 7
      %p56 = por %p54, %p55
      %p57 = scmp.ne.s32.totalorder %s49, %s52
      %p58 = scmp.eq.s32.totalorder %s13, 0
      %p59 = por %p57, %p58
      %p60 = scmp.ne.s32.totalorder %s49, %s52
      %p61 = scmp.eq.s32.totalorder %s18, 7
      %p62 = por %p60, %p61
      %p63 = scmp.ne.s32.totalorder %s52, %s53
      %p64 = scmp.eq.s32.totalorder %s18, 0
      %p65 = por %p63, %p64
      %p66 = scmp.ne.s32.totalorder %s52, %s53
      %p67 = scmp.eq.s32.totalorder %s19, 7
      %p68 = por %p66, %p67
      %p70 = scmp.ne.s32.totalorder %s53, %s69
      %p71 = scmp.eq.s32.totalorder %s19, 0
      %p72 = por %p70, %p71
      %p73 = scmp.le.s32.totalorder 1, %s13
      %p74 = scmp.lt.s32.totalorder %s13, 9
      %p75 = pnand %p73, %p74
      %p76 = pneg %p75
      // Predicated region
      $region9: #{fwd.1} parent=5 // pred_check
        _
      $region10: #{fwd.1} parent=5 // pred_check_branch
        %78 = sbr.rel (%p75) target = $region12
      $region11: #{fwd.1} parent=5 // pred_region
        %s79 = ssub.s32 %s13, 1
      $region12: #{fwd.1} parent=5 // pred_fallthru
        _
      %p80 = scmp.lt.s32.totalorder %s13, 8
      // Predicated region
      $region13: #{fwd.1} parent=5 // pred_check
        %p81 = pneg %p80
      $region14: #{fwd.1} parent=5 // pred_check_branch
        %83 = sbr.rel (%p81) target = $region16
      $region15: #{fwd.1} parent=5 // pred_region
        // Predicated region
        $region17: #{fwd.1} parent=15 // pred_check
          %p84 = pneg %p33
        $region18: #{fwd.1} parent=15 // pred_check_branch
          %86 = sbr.rel (%p84) target = $region20
        $region19: #{fwd.1} parent=15 // pred_region
          %s87 = sand.u32 %s23, 1
          %s88 = scalar_lea.sflag [#allocation3], %s87
          %s89 = sand.u32 %s23, 1
          %s90 = smul.addr %s89, 16
          %s91 = scalar_lea.vmem [#allocation2], %s90
          %93 = vsyncadd %s88, 0
          %s94 = smul.addr %s13, 2
          %s95 = smul.addr %s94, 8
          %s96 = scalar_lea.hbm %s0, %s95
          %s97 = sshll.u32 %s96, 4
          %s98 = int_to_ptr.hbm [resolvable:$true] %s97
          %s99 = sshll.u32 %s91, 4
          %s100 = int_to_ptr.vmem [resolvable:$true] %s99
          %105 = dma.hbm_to_vmem [thread:$0]  %s98, 256, %s100, %s88, 128, 128, 8
        $region20: #{fwd.1} parent=15 // pred_fallthru
          _
      $region16: #{fwd.1} parent=5 // pred_fallthru
        _
      %p106 = scmp.le.s32.totalorder 1, %s13
      %p107 = scmp.lt.s32.totalorder %s13, 9
      %p108 = pnand %p106, %p107
      %p109 = pneg %p108
      // Predicated region
      $region21: #{fwd.1} parent=5 // pred_check
        _
      $region22: #{fwd.1} parent=5 // pred_check_branch
        %111 = sbr.rel (%p108) target = $region24
      $region23: #{fwd.1} parent=5 // pred_region
        %s112 = ssub.s32 %s13, 1
        %s113 = sand.u32 %s26, 1
        %s114 = scalar_lea.sflag [#allocation3], %s113
        %s115 = sand.u32 %s26, 1
        %s116 = smul.addr %s115, 16
        %s117 = scalar_lea.vmem [#allocation2], %s116
        // Predicated region
        $region25: #{fwd.1} parent=23 // pred_check
          %p118 = pneg %p39
        $region26: #{fwd.1} parent=23 // pred_check_branch
          %120 = sbr.rel (%p118) target = $region28
        $region27: #{fwd.1} parent=23 // pred_region
          %122 = dma.done %s114, 256
        $region28: #{fwd.1} parent=23 // pred_fallthru
          _
        %s123 = sand.u32 %s26, 1
        %s124 = scalar_lea.sflag [#allocation3], %s123
        %s125 = sand.u32 %s26, 1
        %s126 = smul.addr %s125, 16
        %s127 = scalar_lea.vmem [#allocation2], %s126
        %p128 = pneg %p39
        %p129 = pneg %p36
        %p130 = pneg %p65
        %p131 = pneg %p62
        %s132 = sand.u32 %s52, 1
        %s133 = scalar_lea.sflag [#allocation4], %s132
        %s134 = sand.u32 %s52, 1
        %s135 = smul.addr %s134, 8
        %s136 = scalar_lea.vmem [#allocation5], %s135
        %v137 = vld [vmem:[%s117 + $0x4] sm:$0xff]
        %139 = vrot.lane.b32.xlu0 %v137, 124
        %v140 = vpop.permute.xlu0 %139
        %vm142 = vcmask 64512
        %143 = vst.msk [vmem:[%s136] sm:$0xff] %vm142, %v140
        %s144 = sand.u32 %s52, 1
        %s145 = scalar_lea.sflag [#allocation4], %s144
        %s146 = sand.u32 %s52, 1
        %s147 = smul.addr %s146, 8
        %s148 = scalar_lea.vmem [#allocation5], %s147
        // Predicated region
        $region29: #{fwd.1} parent=23 // pred_check
          %p149 = pneg %p62
        $region30: #{fwd.1} parent=23 // pred_check_branch
          %151 = sbr.rel (%p149) target = $region32
        $region31: #{fwd.1} parent=23 // pred_region
          %153 = vsyncadd %s145, 0
          %s154 = smul.addr %s18, 8
          %s155 = scalar_lea.hbm %s1, %s154
          %s157 = sshll.u32 %s148, 4
          %s158 = int_to_ptr.vmem [resolvable:$true] %s157
          %s159 = sshll.u32 %s155, 4
          %s160 = int_to_ptr.hbm [resolvable:$true] %s159
          %162 = dma.vmem_to_hbm [thread:$0]  %s158, 128, %s160, %s145
        $region32: #{fwd.1} parent=23 // pred_fallthru
          _
      $region24: #{fwd.1} parent=5 // pred_fallthru
        _
      %p163 = scmp.le.s32.totalorder 2, %s13
      // Predicated region
      $region33: #{fwd.1} parent=5 // pred_check
        %p164 = pneg %p163
      $region34: #{fwd.1} parent=5 // pred_check_branch
        %166 = sbr.rel (%p164) target = $region36
      $region35: #{fwd.1} parent=5 // pred_region
        %s167 = ssub.s32 %s13, 2
        // Predicated region
        $region37: #{fwd.1} parent=35 // pred_check
          %p168 = pneg %p68
        $region38: #{fwd.1} parent=35 // pred_check_branch
          %170 = sbr.rel (%p168) target = $region40
        $region39: #{fwd.1} parent=35 // pred_region
          %s171 = sand.u32 %s53, 1
          %s172 = scalar_lea.sflag [#allocation4], %s171
          %s173 = sand.u32 %s53, 1
          %s174 = smul.addr %s173, 8
          %s175 = scalar_lea.vmem [#allocation5], %s174
          %177 = dma.done %s172, 128
        $region40: #{fwd.1} parent=35 // pred_fallthru
          _
      $region36: #{fwd.1} parent=5 // pred_fallthru
        _
    $region6: #{fwd.1} parent=1 // loop_footer
      %s17 = sadd.s32 1, %s13
    $region7: #{fwd.1} parent=1 // loop_footer_branch
      %12 = sbr.rel target = $region3
    $region8: #{fwd.1} parent=1 // loop_exit
      _
    %178 = vsyncpa [#allocation3], 1
    %s179 = scalar_lea.sflag [#allocation3], 1
    %180 = vsyncpa %s179, 1
    %181 = vsyncpa [#allocation4], 1
    %s182 = scalar_lea.sflag [#allocation4], 1
    %183 = vsyncpa %s182, 1

</llo_original>
